<compile_context>
chip_gen: v6e
topology: v6e:2x2x1
jax: 0.10.0
libtpu: 0.0.40
codegen_flags: <defaults>
</compile_context>

<pallas_src>
import functools

import jax
import jax.numpy as jnp
from jax import lax
from jax.experimental import pallas as pl
from jax.experimental.pallas import tpu as pltpu


_REG_PATCH_BUDGET_BYTES = 128 * 1024   # ~32 vregs of in-register im2col patch


def _conv_in_relu_kernel(x_ref, w_ref, gamma_ref, beta_ref, o_ref, xpad_ref,
                         *scratch_rest, B, Cin, Cin_pad, H, W, KH, KW, ph, pw,
                         pad_off, L, eps, use_scratch):
    # x_ref:     (B, Cin, H*W)      flattened (unpadded) images
    # w_ref:     (Cout, Kdim)       weights, K ordered (kh, kw, cin[_pad])
    # gamma_ref: (Cout, 1)          instance-norm affine scale
    # beta_ref:  (Cout, 1)          instance-norm affine shift
    # o_ref:     (B, Cout, H*W)     lane-dense output block
    # xpad_ref:  (B, Cin, L)        flat zero-padded image scratch
    # scratch_rest: (p_ref,) only when use_scratch — (Kdim, B*H*W) im2col scratch
    HW = H * W
    p_ref = scratch_rest[0] if use_scratch else None

    # ---- Fused zero padding: zero ONLY the halo lanes, then drop the images
    # into the interior (pad_off is 128-aligned).  The interior is fully
    # overwritten every step, so the halos are the only lanes that need zeros.
    left = pad_off
    right = L - pad_off - HW
    if left > 0:
        xpad_ref[:, :, pl.ds(0, left)] = jnp.zeros((B, Cin, left), xpad_ref.dtype)
    if right > 0:
        xpad_ref[:, :, pl.ds(pad_off + HW, right)] = jnp.zeros(
            (B, Cin, right), xpad_ref.dtype)
    xpad_ref[:, :, pl.ds(pad_off, HW)] = x_ref[...]

    # ---- Hoisted border masks: one iota + compare + broadcast per distinct
    # nonzero column offset (at most 2*pw of them), reused by every tap/batch.
    col = lax.broadcasted_iota(jnp.int32, (1, HW), 1) % W
    col_masks = {}
    for kw in range(KW):
        c_off = kw - pw
        if c_off < 0 and c_off not in col_masks:
            col_masks[c_off] = jnp.broadcast_to(col >= -c_off, (Cin, HW))
        elif c_off > 0 and c_off not in col_masks:
            col_masks[c_off] = jnp.broadcast_to(col < (W - c_off), (Cin, HW))

    base = pad_off - (ph * W + pw)   # flat start offset of tap (kh=0, kw=0)

    def load_tap(b, kh, kw):
        # Stride-1 "same" conv => every tap is a contiguous window of the flat
        # padded image.  Out-of-range rows land in the zero halo; out-of-range
        # columns wrap onto the neighbouring row and are masked out per tap.
        patch = xpad_ref[b, :, pl.ds(base + kh * W + kw, HW)]   # (Cin, HW)
        c_off = kw - pw
        if c_off != 0:
            patch = jnp.where(col_masks[c_off], patch, 0.0)
        return patch

    if use_scratch:
        # Scratch path (large blocks): 8-sublane-aligned tap slabs.
        if Cin_pad > Cin:
            zrows = jnp.zeros((Cin_pad - Cin, HW), xpad_ref.dtype)
        for b in range(B):
            for kh in range(KH):
                for kw in range(KW):
                    patch = load_tap(b, kh, kw)
                    if Cin_pad > Cin:
                        patch = jnp.concatenate([patch, zrows], axis=0)  # (8k, HW)
                    t = kh * KW + kw
                    p_ref[pl.ds(t * Cin_pad, Cin_pad), pl.ds(b * HW, HW)] = patch
        # Single MXU contraction: (Cout, K') x (K', B*HW) -> f32 (Cout, B*HW).
        acc = jnp.dot(w_ref[...], p_ref[...], preferred_element_type=jnp.float32)
    else:
        # Register path (small blocks): build the patch as a value, no VMEM
        # round-trip and no masked scratch stores.
        cols = []
        for b in range(B):
            taps = [load_tap(b, kh, kw) for kh in range(KH) for kw in range(KW)]
            cols.append(jnp.concatenate(taps, axis=0))          # (K, HW)
        p = cols[0] if B == 1 else jnp.concatenate(cols, axis=1)  # (K, B*HW)
        acc = jnp.dot(w_ref[...], p, preferred_element_type=jnp.float32)

    # ---- Per-sample instance norm (two-pass stats) + affine + ReLU.
    gamma = gamma_ref[...]              # (Cout, 1)
    beta = beta_ref[...]
    inv_hw = 1.0 / HW
    for b in range(B):
        a = acc[:, b * HW:(b + 1) * HW]                 # (Cout, HW), lane-aligned
        mean = jnp.sum(a, axis=1, keepdims=True) * inv_hw
        d = a - mean
        var = jnp.sum(d * d, axis=1, keepdims=True) * inv_hw   # biased, as in PyTorch
        scale = gamma * lax.rsqrt(var + eps)            # (Cout, 1)
        y = jnp.maximum(d * scale + beta, 0.0)          # normalize+affine+ReLU
        o_ref[b] = y.astype(o_ref.dtype)                # unmasked lane-dense store


def _tpu_generation_params():
    """Return (tensorcores per chip, usable VMEM budget in bytes)."""
    kind = ""
    try:
        kind = (getattr(jax.devices()[0], "device_kind", "") or "")
    except Exception:
        pass
    k = kind.lower()
    if ("v5e" in k) or ("v5 lite" in k) or ("v6e" in k) or ("v6 lite" in k):
        return 1, 96 * 1024 * 1024          # single TC, 128 MiB physical VMEM
    if ("v7" in k) or ("7x" in k):
        return 2, 48 * 1024 * 1024          # 2 TCs per chip, 64 MiB physical VMEM
    return 2, 48 * 1024 * 1024              # unknown / megacore: conservative


def basic_conv2d_ins(x_nchw, w_oihw, gamma, beta, *, stride, padding, eps=1e-3,
                     batch_block=None, use_scratch=None):
    N, Cin, H, W = map(int, x_nchw.shape)
    Cout, Cin_w, KH, KW = map(int, w_oihw.shape)
    assert Cin == Cin_w
    sh = sw = int(stride)
    ph = pw = int(padding)
    Hout = (H + 2 * ph - KH) // sh + 1
    Wout = (W + 2 * pw - KW) // sw + 1
    assert sh == 1 and sw == 1 and Hout == H and Wout == W, (
        "only stride-1 'same' convolutions are supported by this kernel")

    HW = H * W
    K = KH * KW * Cin
    Cin_pad = ((Cin + 7) // 8) * 8
    Kp = KH * KW * Cin_pad

    # Flat padded-image scratch: real data sits at a 128-aligned lane offset with
    # enough zeros on both sides to cover every tap's shifted window.
    halo = ph * W + pw
    pad_off = pl.cdiv(halo, 128) * 128
    L = pl.cdiv(pad_off + HW + halo, 128) * 128

    num_tc, vmem_budget = _tpu_generation_params()
    dt = jnp.float32   # keep f32 end-to-end (bf16 would loosen the 1e-4 check)

    def _plan(bb):
        us = use_scratch
        if us is None:
            us = (4 * K * bb * HW) > _REG_PATCH_BUDGET_BYTES
        kdim = Kp if us else K
        est = (2 * 4 * bb * Cin * HW            # input block, double-buffered
               + 2 * 4 * bb * Cout * HW         # output block, double-buffered
               + 4 * bb * Cin * L               # padded-image scratch
               + (4 * kdim * bb * HW if us else 0)   # im2col scratch
               + 4 * Cout * (kdim + 2))         # weights + affine params
        return us, kdim, est

    if batch_block is None:
        B = 1   # final fallback
        for cand in [b for b in range(N, 0, -1) if N % b == 0]:
            steps = N // cand
            # On v7x keep at least one grid step per TensorCore; on v5e/v6e a
            # single step (B = N) minimizes per-step overhead.
            if num_tc > 1 and N >= num_tc and steps < num_tc:
                continue
            _, _, est = _plan(cand)
            if est <= vmem_budget:
                B = cand
                break
    else:
        B = int(batch_block)
        assert N % B == 0
    us, kdim, est = _plan(B)

    # Activation path: free reshape only (spatial dims already innermost in NCHW).
    x_flat = x_nchw.reshape(N, Cin, HW).astype(dt)
    # Weights are tiny/constant: OIHW -> (Cout, KH*KW*Cin[_pad]), K ordered
    # (kh, kw, cin) to match the im2col row layout; zero-pad cin when the scratch
    # path uses 8-aligned tap slabs.
    w4 = jnp.transpose(w_oihw, (0, 2, 3, 1)).astype(dt)     # (Cout, KH, KW, Cin)
    if us and Cin_pad > Cin:
        w4 = jnp.pad(w4, ((0, 0), (0, 0), (0, 0), (0, Cin_pad - Cin)))
    w2 = w4.reshape(Cout, kdim)
    gamma2 = gamma.reshape(Cout, 1).astype(jnp.float32)
    beta2 = beta.reshape(Cout, 1).astype(jnp.float32)

    scratch_shapes = [pltpu.VMEM((B, Cin, L), dt)]          # flat zero-padded images
    if us:
        scratch_shapes.append(pltpu.VMEM((kdim, B * HW), dt))   # im2col patch matrix

    kernel = functools.partial(
        _conv_in_relu_kernel, B=B, Cin=Cin, Cin_pad=Cin_pad, H=H, W=W, KH=KH,
        KW=KW, ph=ph, pw=pw, pad_off=pad_off, L=L, eps=eps, use_scratch=us)

    cp_kwargs = dict(dimension_semantics=("parallel",))
    if est > 12 * 1024 * 1024:   # above the smallest scoped-VMEM default: raise it
        cp_kwargs["vmem_limit_bytes"] = int(
            min(max(2 * est, 32 * 1024 * 1024), vmem_budget))

    out_flat = pl.pallas_call(
        kernel,
        out_shape=jax.ShapeDtypeStruct((N, Cout, HW), jnp.float32),
        grid=(N // B,),
        in_specs=[
            pl.BlockSpec((B, Cin, HW), lambda i: (i, 0, 0)),
            pl.BlockSpec((Cout, kdim), lambda i: (0, 0)),
            pl.BlockSpec((Cout, 1), lambda i: (0, 0)),
            pl.BlockSpec((Cout, 1), lambda i: (0, 0)),
        ],
        out_specs=pl.BlockSpec((B, Cout, HW), lambda i: (i, 0, 0)),
        scratch_shapes=scratch_shapes,
        compiler_params=pltpu.CompilerParams(**cp_kwargs),
    )(x_flat, w2, gamma2, beta2)

    # (N, Cout, H*W) -> NCHW is a free reshape (no transpose).
    return out_flat.reshape(N, Cout, Hout, Wout)


def _reference(x_nchw, w_oihw, gamma, beta, *, stride, padding, eps=1e-3):
    """Pure-JAX reference of Conv2d(bias=False) + InstanceNorm2d(affine) + ReLU."""
    y = lax.conv_general_dilated(
        x_nchw.astype(jnp.float32), w_oihw.astype(jnp.float32),
        window_strides=(stride, stride),
        padding=((padding, padding), (padding, padding)),
        dimension_numbers=("NCHW", "OIHW", "NCHW"),
    )
    mean = jnp.mean(y, axis=(2, 3), keepdims=True)
    var = jnp.mean((y - mean) ** 2, axis=(2, 3), keepdims=True)
    yn = (y - mean) * lax.rsqrt(var + eps)
    yn = yn * gamma.reshape(1, -1, 1, 1) + beta.reshape(1, -1, 1, 1)
    return jnp.maximum(yn, 0.0)


if __name__ == "__main__":
    # BasicConv2d_Ins(in_planes=4, out_planes=8, kernal_size=3, stride=1, padding=1)
    N, Cin, H, W = 2, 4, 16, 16
    Cout, KH, KW = 8, 3, 3
    stride, padding = 1, 1

    key = jax.random.PRNGKey(0)
    kx, kw_, kg, kb = jax.random.split(key, 4)
    x = jax.random.normal(kx, (N, Cin, H, W), dtype=jnp.float32)
    w = jax.random.normal(kw_, (Cout, Cin, KH, KW), dtype=jnp.float32) * 0.1
    gamma = 1.0 + 0.1 * jax.random.normal(kg, (Cout,), dtype=jnp.float32)
    beta = 0.1 * jax.random.normal(kb, (Cout,), dtype=jnp.float32)

    ref = jax.block_until_ready(
        _reference(x, w, gamma, beta, stride=stride, padding=padding, eps=1e-3))

    # Auto plan: single step on v5e/v6e, two parallel steps on v7x (register path).
    out = jax.block_until_ready(
        basic_conv2d_ins(x, w, gamma, beta, stride=stride, padding=padding, eps=1e-3))
    assert out.shape == (N, Cout, H, W), out.shape
    assert jnp.max(jnp.abs(out - ref)) < 1e-4, float(jnp.max(jnp.abs(out - ref)))

    # Multi-step grid (one image per step), register path.
    out_b1 = jax.block_until_ready(
        basic_conv2d_ins(x, w, gamma, beta, stride=stride, padding=padding,
                         eps=1e-3, batch_block=1))
    assert jnp.max(jnp.abs(out_b1 - ref)) < 1e-4, float(jnp.max(jnp.abs(out_b1 - ref)))

    # Large-block fallback: 8-sublane-aligned im2col scratch path, single step.
    out_sc = jax.block_until_ready(
        basic_conv2d_ins(x, w, gamma, beta, stride=stride, padding=padding,
                         eps=1e-3, batch_block=2, use_scratch=True))
    assert jnp.max(jnp.abs(out_sc - ref)) < 1e-4, float(jnp.max(jnp.abs(out_sc - ref)))

    print("KERNEL_OK")
</pallas_src>

<mosaic_0001>
module attributes {stable_mosaic.version = 11 : i64} {
  func.func @_conv_in_relu_kernel(%arg0: i32, %arg1: memref<1x4x256xf32, #tpu.memory_space<vmem>>, %arg2: memref<8x36xf32, #tpu.memory_space<vmem>>, %arg3: memref<8x1xf32, #tpu.memory_space<vmem>>, %arg4: memref<8x1xf32, #tpu.memory_space<vmem>>, %arg5: memref<1x8x256xf32, #tpu.memory_space<vmem>>, %arg6: memref<1x4x512xf32, #tpu.memory_space<vmem>>) attributes {dimension_semantics = [#tpu.dimension_semantics<parallel>], iteration_bounds = array<i64: 2>, scalar_prefetch = 0 : i64, scratch_operands = 1 : i64, tpu.core_type = #tpu.core_type<tc>, window_params = [{transform_indices = @transform_0, window_bounds = array<i64: 1, 4, 256>}, {pipeline_mode = #tpu.pipeline_mode<synchronous>, transform_indices = @transform_1, window_bounds = array<i64: 8, 36>}, {pipeline_mode = #tpu.pipeline_mode<synchronous>, transform_indices = @transform_2, window_bounds = array<i64: 8, 1>}, {pipeline_mode = #tpu.pipeline_mode<synchronous>, transform_indices = @transform_3, window_bounds = array<i64: 8, 1>}, {transform_indices = @transform_4, window_bounds = array<i64: 1, 8, 256>}]} {
    %cst = arith.constant 0.000000e+00 : f32
    %0 = vector.broadcast %cst : f32 to vector<1x4x128xf32>
    %c0 = arith.constant 0 : index
    %c0_0 = arith.constant 0 : index
    %c0_1 = arith.constant 0 : index
    %1 = vector.load %arg6[%c0, %c0_0, %c0_1] : memref<1x4x512xf32, #tpu.memory_space<vmem>>, vector<1x4x128xf32>
    tpu.vector_store %arg6[%c0, %c0_0, %c0_1], %0 {strides = array<i32>} : memref<1x4x512xf32, #tpu.memory_space<vmem>>, vector<1x4x128xf32>,
    %cst_2 = arith.constant 0.000000e+00 : f32
    %2 = vector.broadcast %cst_2 : f32 to vector<1x4x128xf32>
    %c0_3 = arith.constant 0 : index
    %c0_4 = arith.constant 0 : index
    %c384 = arith.constant 384 : index
    %3 = vector.load %arg6[%c0_3, %c0_4, %c384] : memref<1x4x512xf32, #tpu.memory_space<vmem>>, vector<1x4x128xf32>
    tpu.vector_store %arg6[%c0_3, %c0_4, %c384], %2 {strides = array<i32>} : memref<1x4x512xf32, #tpu.memory_space<vmem>>, vector<1x4x128xf32>,
    %c0_5 = arith.constant 0 : index
    %c0_6 = arith.constant 0 : index
    %c0_7 = arith.constant 0 : index
    %4 = vector.load %arg1[%c0_5, %c0_6, %c0_7] : memref<1x4x256xf32, #tpu.memory_space<vmem>>, vector<1x4x256xf32>
    %c0_8 = arith.constant 0 : index
    %c0_9 = arith.constant 0 : index
    %c128 = arith.constant 128 : index
    %5 = vector.load %arg6[%c0_8, %c0_9, %c128] : memref<1x4x512xf32, #tpu.memory_space<vmem>>, vector<1x4x256xf32>
    tpu.vector_store %arg6[%c0_8, %c0_9, %c128], %4 {strides = array<i32>} : memref<1x4x512xf32, #tpu.memory_space<vmem>>, vector<1x4x256xf32>,
    %6 = tpu.iota {dimensions = array<i32: 1>} : vector<1x256xi32>
    %c16_i32 = arith.constant 16 : i32
    %c0_i32 = arith.constant 0 : i32
    %7 = arith.cmpi eq, %c16_i32, %c0_i32 : i32
    %c1_i32 = arith.constant 1 : i32
    %8 = arith.select %7, %c1_i32, %c16_i32 : i32
    %9 = vector.broadcast %8 : i32 to vector<1x256xi32>
    %10 = arith.remsi %6, %9 : vector<1x256xi32>
    %c0_i32_10 = arith.constant 0 : i32
    %11 = vector.broadcast %c0_i32_10 : i32 to vector<1x256xi32>
    %12 = arith.cmpi ne, %10, %11 : vector<1x256xi32>
    %c0_i32_11 = arith.constant 0 : i32
    %13 = vector.broadcast %c0_i32_11 : i32 to vector<1x256xi32>
    %14 = arith.cmpi slt, %10, %13 : vector<1x256xi32>
    %c0_i32_12 = arith.constant 0 : i32
    %15 = arith.cmpi slt, %8, %c0_i32_12 : i32
    %16 = vector.broadcast %15 : i1 to vector<1x256xi1>
    %17 = vector.broadcast %16 : vector<1x256xi1> to vector<1x256xi1>
    %18 = arith.xori %14, %17 : vector<1x256xi1>
    %19 = arith.andi %18, %12 : vector<1x256xi1>
    %20 = vector.broadcast %8 : i32 to vector<1x256xi32>
    %21 = arith.addi %10, %20 : vector<1x256xi32>
    %22 = arith.select %19, %21, %10 : vector<1x256xi1>, vector<1x256xi32>
    %c1_i32_13 = arith.constant 1 : i32
    %23 = vector.broadcast %c1_i32_13 : i32 to vector<1x256xi32>
    %24 = arith.cmpi sge, %22, %23 : vector<1x256xi32>
    %25 = vector.shape_cast %24 : vector<1x256xi1> to vector<1x256xi1>
    %26 = vector.broadcast %25 : vector<1x256xi1> to vector<4x256xi1>
    %c15_i32 = arith.constant 15 : i32
    %27 = vector.broadcast %c15_i32 : i32 to vector<1x256xi32>
    %28 = arith.cmpi slt, %22, %27 : vector<1x256xi32>
    %29 = vector.shape_cast %28 : vector<1x256xi1> to vector<1x256xi1>
    %30 = vector.broadcast %29 : vector<1x256xi1> to vector<4x256xi1>
    %c0_14 = arith.constant 0 : index
    %c0_15 = arith.constant 0 : index
    %c111 = arith.constant 111 : index
    %31 = vector.load %arg6[%c0_14, %c0_15, %c111] : memref<1x4x512xf32, #tpu.memory_space<vmem>>, vector<1x4x256xf32>
    %32 = vector.shape_cast %31 : vector<1x4x256xf32> to vector<4x256xf32>
    %cst_16 = arith.constant 0.000000e+00 : f32
    %33 = vector.broadcast %cst_16 : f32 to vector<4x256xf32>
    %34 = arith.select %26, %32, %33 : vector<4x256xi1>, vector<4x256xf32>
    %c0_17 = arith.constant 0 : index
    %c0_18 = arith.constant 0 : index
    %c112 = arith.constant 112 : index
    %35 = vector.load %arg6[%c0_17, %c0_18, %c112] : memref<1x4x512xf32, #tpu.memory_space<vmem>>, vector<1x4x256xf32>
    %36 = vector.shape_cast %35 : vector<1x4x256xf32> to vector<4x256xf32>
    %c0_19 = arith.constant 0 : index
    %c0_20 = arith.constant 0 : index
    %c113 = arith.constant 113 : index
    %37 = vector.load %arg6[%c0_19, %c0_20, %c113] : memref<1x4x512xf32, #tpu.memory_space<vmem>>, vector<1x4x256xf32>
    %38 = vector.shape_cast %37 : vector<1x4x256xf32> to vector<4x256xf32>
    %cst_21 = arith.constant 0.000000e+00 : f32
    %39 = vector.broadcast %cst_21 : f32 to vector<4x256xf32>
    %40 = arith.select %30, %38, %39 : vector<4x256xi1>, vector<4x256xf32>
    %c0_22 = arith.constant 0 : index
    %c0_23 = arith.constant 0 : index
    %c127 = arith.constant 127 : index
    %41 = vector.load %arg6[%c0_22, %c0_23, %c127] : memref<1x4x512xf32, #tpu.memory_space<vmem>>, vector<1x4x256xf32>
    %42 = vector.shape_cast %41 : vector<1x4x256xf32> to vector<4x256xf32>
    %cst_24 = arith.constant 0.000000e+00 : f32
    %43 = vector.broadcast %cst_24 : f32 to vector<4x256xf32>
    %44 = arith.select %26, %42, %43 : vector<4x256xi1>, vector<4x256xf32>
    %c0_25 = arith.constant 0 : index
    %c0_26 = arith.constant 0 : index
    %c128_27 = arith.constant 128 : index
    %45 = vector.load %arg6[%c0_25, %c0_26, %c128_27] : memref<1x4x512xf32, #tpu.memory_space<vmem>>, vector<1x4x256xf32>
    %46 = vector.shape_cast %45 : vector<1x4x256xf32> to vector<4x256xf32>
    %c0_28 = arith.constant 0 : index
    %c0_29 = arith.constant 0 : index
    %c129 = arith.constant 129 : index
    %47 = vector.load %arg6[%c0_28, %c0_29, %c129] : memref<1x4x512xf32, #tpu.memory_space<vmem>>, vector<1x4x256xf32>
    %48 = vector.shape_cast %47 : vector<1x4x256xf32> to vector<4x256xf32>
    %cst_30 = arith.constant 0.000000e+00 : f32
    %49 = vector.broadcast %cst_30 : f32 to vector<4x256xf32>
    %50 = arith.select %30, %48, %49 : vector<4x256xi1>, vector<4x256xf32>
    %c0_31 = arith.constant 0 : index
    %c0_32 = arith.constant 0 : index
    %c143 = arith.constant 143 : index
    %51 = vector.load %arg6[%c0_31, %c0_32, %c143] : memref<1x4x512xf32, #tpu.memory_space<vmem>>, vector<1x4x256xf32>
    %52 = vector.shape_cast %51 : vector<1x4x256xf32> to vector<4x256xf32>
    %cst_33 = arith.constant 0.000000e+00 : f32
    %53 = vector.broadcast %cst_33 : f32 to vector<4x256xf32>
    %54 = arith.select %26, %52, %53 : vector<4x256xi1>, vector<4x256xf32>
    %c0_34 = arith.constant 0 : index
    %c0_35 = arith.constant 0 : index
    %c144 = arith.constant 144 : index
    %55 = vector.load %arg6[%c0_34, %c0_35, %c144] : memref<1x4x512xf32, #tpu.memory_space<vmem>>, vector<1x4x256xf32>
    %56 = vector.shape_cast %55 : vector<1x4x256xf32> to vector<4x256xf32>
    %c0_36 = arith.constant 0 : index
    %c0_37 = arith.constant 0 : index
    %c145 = arith.constant 145 : index
    %57 = vector.load %arg6[%c0_36, %c0_37, %c145] : memref<1x4x512xf32, #tpu.memory_space<vmem>>, vector<1x4x256xf32>
    %58 = vector.shape_cast %57 : vector<1x4x256xf32> to vector<4x256xf32>
    %cst_38 = arith.constant 0.000000e+00 : f32
    %59 = vector.broadcast %cst_38 : f32 to vector<4x256xf32>
    %60 = arith.select %30, %58, %59 : vector<4x256xi1>, vector<4x256xf32>
    %61 = tpu.concatenate %34, %36, %40, %44, %46, %50, %54, %56, %60 in 0 : vector<4x256xf32>, vector<4x256xf32>, vector<4x256xf32>, vector<4x256xf32>, vector<4x256xf32>, vector<4x256xf32>, vector<4x256xf32>, vector<4x256xf32>, vector<4x256xf32> -> vector<36x256xf32>
    %c0_39 = arith.constant 0 : index
    %c0_40 = arith.constant 0 : index
    %62 = vector.load %arg2[%c0_39, %c0_40] : memref<8x36xf32, #tpu.memory_space<vmem>>, vector<8x36xf32>
    %cst_41 = arith.constant dense<0.000000e+00> : vector<8x256xf32>
    %63 = tpu.matmul %62, %61, %cst_41 {dimension_numbers = #tpu.dot_dimension_numbers<[1], [0], [0], [1], [0, 0, 1, 1], [], []>} : vector<8x36xf32>, vector<36x256xf32>, vector<8x256xf32> -> vector<8x256xf32>
    %c0_42 = arith.constant 0 : index
    %c0_43 = arith.constant 0 : index
    %64 = vector.load %arg3[%c0_42, %c0_43] : memref<8x1xf32, #tpu.memory_space<vmem>>, vector<8x1xf32>
    %c0_44 = arith.constant 0 : index
    %c0_45 = arith.constant 0 : index
    %65 = vector.load %arg4[%c0_44, %c0_45] : memref<8x1xf32, #tpu.memory_space<vmem>>, vector<8x1xf32>
    %cst_46 = arith.constant dense<0.000000e+00> : vector<8xf32>
    %66 = vector.multi_reduction <add>, %63, %cst_46 [1] : vector<8x256xf32> to vector<8xf32>
    %67 = vector.shape_cast %66 : vector<8xf32> to vector<8x1xf32>
    %cst_47 = arith.constant 3.906250e-03 : f32
    %68 = vector.broadcast %cst_47 : f32 to vector<8x1xf32>
    %69 = arith.mulf %67, %68 : vector<8x1xf32>
    %70 = vector.broadcast %69 : vector<8x1xf32> to vector<8x256xf32>
    %71 = arith.subf %63, %70 : vector<8x256xf32>
    %72 = arith.mulf %71, %71 : vector<8x256xf32>
    %cst_48 = arith.constant dense<0.000000e+00> : vector<8xf32>
    %73 = vector.multi_reduction <add>, %72, %cst_48 [1] : vector<8x256xf32> to vector<8xf32>
    %74 = vector.shape_cast %73 : vector<8xf32> to vector<8x1xf32>
    %cst_49 = arith.constant 3.906250e-03 : f32
    %75 = vector.broadcast %cst_49 : f32 to vector<8x1xf32>
    %76 = arith.mulf %74, %75 : vector<8x1xf32>
    %cst_50 = arith.constant 1.000000e-03 : f32
    %77 = vector.broadcast %cst_50 : f32 to vector<8x1xf32>
    %78 = arith.addf %76, %77 : vector<8x1xf32>
    %79 = math.rsqrt %78 : vector<8x1xf32>
    %80 = arith.mulf %64, %79 : vector<8x1xf32>
    %81 = vector.broadcast %80 : vector<8x1xf32> to vector<8x256xf32>
    %82 = arith.mulf %71, %81 : vector<8x256xf32>
    %83 = vector.broadcast %65 : vector<8x1xf32> to vector<8x256xf32>
    %84 = arith.addf %82, %83 : vector<8x256xf32>
    %cst_51 = arith.constant 0.000000e+00 : f32
    %85 = vector.broadcast %cst_51 : f32 to vector<8x256xf32>
    %86 = arith.maximumf %84, %85 : vector<8x256xf32>
    %c0_52 = arith.constant 0 : index
    %c0_53 = arith.constant 0 : index
    %c0_54 = arith.constant 0 : index
    %87 = vector.load %arg5[%c0_52, %c0_53, %c0_54] : memref<1x8x256xf32, #tpu.memory_space<vmem>>, vector<1x8x256xf32>
    %88 = vector.shape_cast %87 : vector<1x8x256xf32> to vector<8x256xf32>
    %89 = vector.shape_cast %86 : vector<8x256xf32> to vector<1x8x256xf32>
    tpu.vector_store %arg5[%c0_52, %c0_53, %c0_54], %89 {strides = array<i32>} : memref<1x8x256xf32, #tpu.memory_space<vmem>>, vector<1x8x256xf32>,
    return
  }
  func.func @transform_0(%arg0: i32) -> (i32, i32, i32) {
    %c0_i32 = arith.constant 0 : i32
    %c0_i32_0 = arith.constant 0 : i32
    %c0_i32_1 = arith.constant 0 : i32
    return %arg0, %c0_i32, %c0_i32_0 : i32, i32, i32
  }
  func.func @transform_1(%arg0: i32) -> (i32, i32) {
    %c0_i32 = arith.constant 0 : i32
    %c0_i32_0 = arith.constant 0 : i32
    %c0_i32_1 = arith.constant 0 : i32
    return %c0_i32, %c0_i32_0 : i32, i32
  }
  func.func @transform_2(%arg0: i32) -> (i32, i32) {
    %c0_i32 = arith.constant 0 : i32
    %c0_i32_0 = arith.constant 0 : i32
    %c0_i32_1 = arith.constant 0 : i32
    return %c0_i32, %c0_i32_0 : i32, i32
  }
  func.func @transform_3(%arg0: i32) -> (i32, i32) {
    %c0_i32 = arith.constant 0 : i32
    %c0_i32_0 = arith.constant 0 : i32
    %c0_i32_1 = arith.constant 0 : i32
    return %c0_i32, %c0_i32_0 : i32, i32
  }
  func.func @transform_4(%arg0: i32) -> (i32, i32, i32) {
    %c0_i32 = arith.constant 0 : i32
    %c0_i32_0 = arith.constant 0 : i32
    %c0_i32_1 = arith.constant 0 : i32
    return %arg0, %c0_i32, %c0_i32_0 : i32, i32, i32
  }
}

</mosaic_0001>

<llo_original>
// kernel: tpu_custom_call.1
$region0: #{tpu_custom_call.1}
  #allocation0 [shape = 'u32[]', space=smem, size = 0x4, offset = 0x4, fixed_abs, tag = 'smem constant byte address 0x4 - core index']
  #allocation1 [shape = 'u32[144,128]{1,0:T(1,128)}', space=vmem, size = 0x12000, scoped, tag = 'internal scratch']
  #allocation2 [shape = 'f32[1,4,512]{2,1,0:T(4,128)}', space=vmem, size = 0x2000, scoped, tag = 'scratch operand']
  %s0 = inlined_call_operand.vmem [shape: f32[2,4,256], index: 0, kind: input, shape index: {}]
  %s1 = inlined_call_operand.hbm [shape: f32[8,36], index: 1, kind: input, shape index: {}]
  %s2 = inlined_call_operand.vmem [shape: f32[8,1], index: 2, kind: input, shape index: {}]
  %s3 = inlined_call_operand.vmem [shape: f32[8,1], index: 3, kind: input, shape index: {}]
  %s4 = inlined_call_operand.hbm [shape: f32[2,8,256], index: 4, kind: output, shape index: {}]
  %s5 = sld [smem:[#allocation0]]
  $region53: #{tpu_custom_call.1} parent=0
    _
  %s7 = ssub.s32 1, %s5
  %s8 = scalar_select 0, %s7, %s5
  $region1: #{tpu_custom_call.1} parent=0
    #allocation3 [shape = 'u8[4096]{0}', space=vmem, size = 0x1000, scoped, tag = 'input window, operand 1, single buffered']
    #allocation4 [shape = 's32[2]{0}', space=sflag, size = 0x8, scoped, tag = 'scoped memory for tpu_custom_call.1']
    #allocation5 [shape = 's32[2]{0}', space=sflag, size = 0x8, scoped, tag = 'scoped memory for tpu_custom_call.1']
    #allocation6 [shape = 'u8[16384]{0}', space=vmem, size = 0x4000, scoped, tag = 'output window, operand 0']
    %9 = vsyncpa [#allocation4], 0
    %10 = vsyncpa [#allocation5], 0
    %s11 = scalar_lea.sflag [#allocation5], 1
    %12 = vsyncpa %s11, 0
    loop: start=0, step=1, limit=4
    $region2: #{tpu_custom_call.1} parent=1 // loop_pre_header
      _
    $region3: #{tpu_custom_call.1} parent=1 // loop_header
      %s14 = sphi 0, %s18
      %p15 = scmp.ge.s32.totalorder %s14, 4
      %s24 = sphi 0, %s26
      %s27 = sphi 0, %s24
      %s28 = sphi 0, %s27
      %s44 = sphi 0, %s28
      %s48 = sphi 0, %s48
      %s50 = sphi 0, %s48
      %s51 = sphi 0, %s50
      %s65 = sphi 0, %s51
      %s69 = sphi 0, %s69
      %s71 = sphi 0, %s69
      %s72 = sphi 0, %s71
      %s86 = sphi 0, %s72
      %s90 = sphi 0, %s90
      %s92 = sphi 0, %s90
      %s93 = sphi 0, %s92
      %s107 = sphi 0, %s93
      %s113 = sphi 0, %s115
      %s116 = sphi 0, %s113
      %s117 = sphi 0, %s116
      %s133 = sphi 0, %s117
    $region4: #{tpu_custom_call.1} parent=1 // loop_header_branch
      %17 = sbr.rel (%p15) target = $region8
    $region5: #{tpu_custom_call.1} parent=1 // loop_body
      %s19 = ssub.s32 %s14, 1
      %s20 = ssub.s32 %s14, 2
      %s21 = sadd.s32 %s14, 1
      %s22 = ssub.s32 %s14, %s21
      %p23 = scmp.eq.s32.totalorder %s22, 0
      %s25 = sadd.s32 %s24, 1
      %s26 = scalar_select %p23, %s24, %s25
      %p29 = pneg %p23
      %p30 = scmp.eq.s32.totalorder %s14, 1
      %p31 = por %p29, %p30
      %p32 = scmp.ne.s32.totalorder %s24, %s27
      %p33 = scmp.eq.s32.totalorder %s14, 0
      %p34 = por %p32, %p33
      %p35 = scmp.ne.s32.totalorder %s24, %s27
      %p36 = scmp.eq.s32.totalorder %s19, 1
      %p37 = por %p35, %p36
      %p38 = scmp.ne.s32.totalorder %s27, %s28
      %p39 = scmp.eq.s32.totalorder %s19, 0
      %p40 = por %p38, %p39
      %p41 = scmp.ne.s32.totalorder %s27, %s28
      %p42 = scmp.eq.s32.totalorder %s20, 1
      %p43 = por %p41, %p42
      %p45 = scmp.ne.s32.totalorder %s28, %s44
      %p46 = scmp.eq.s32.totalorder %s20, 0
      %p47 = por %p45, %p46
      %s49 = sadd.s32 %s48, 1
      %p52 = scmp.eq.s32.totalorder %s14, 1
      %p53 = scmp.ne.s32.totalorder %s48, %s50
      %p54 = scmp.eq.s32.totalorder %s14, 0
      %p55 = por %p53, %p54
      %p56 = scmp.ne.s32.totalorder %s48, %s50
      %p57 = scmp.eq.s32.totalorder %s19, 1
      %p58 = por %p56, %p57
      %p59 = scmp.ne.s32.totalorder %s50, %s51
      %p60 = scmp.eq.s32.totalorder %s19, 0
      %p61 = por %p59, %p60
      %p62 = scmp.ne.s32.totalorder %s50, %s51
      %p63 = scmp.eq.s32.totalorder %s20, 1
      %p64 = por %p62, %p63
      %p66 = scmp.ne.s32.totalorder %s51, %s65
      %p67 = scmp.eq.s32.totalorder %s20, 0
      %p68 = por %p66, %p67
      %s70 = sadd.s32 %s69, 1
      %p73 = scmp.eq.s32.totalorder %s14, 1
      %p74 = scmp.ne.s32.totalorder %s69, %s71
      %p75 = scmp.eq.s32.totalorder %s14, 0
      %p76 = por %p74, %p75
      %p77 = scmp.ne.s32.totalorder %s69, %s71
      %p78 = scmp.eq.s32.totalorder %s19, 1
      %p79 = por %p77, %p78
      %p80 = scmp.ne.s32.totalorder %s71, %s72
      %p81 = scmp.eq.s32.totalorder %s19, 0
      %p82 = por %p80, %p81
      %p83 = scmp.ne.s32.totalorder %s71, %s72
      %p84 = scmp.eq.s32.totalorder %s20, 1
      %p85 = por %p83, %p84
      %p87 = scmp.ne.s32.totalorder %s72, %s86
      %p88 = scmp.eq.s32.totalorder %s20, 0
      %p89 = por %p87, %p88
      %s91 = sadd.s32 %s90, 1
      %p94 = scmp.eq.s32.totalorder %s14, 1
      %p95 = scmp.ne.s32.totalorder %s90, %s92
      %p96 = scmp.eq.s32.totalorder %s14, 0
      %p97 = por %p95, %p96
      %p98 = scmp.ne.s32.totalorder %s90, %s92
      %p99 = scmp.eq.s32.totalorder %s19, 1
      %p100 = por %p98, %p99
      %p101 = scmp.ne.s32.totalorder %s92, %s93
      %p102 = scmp.eq.s32.totalorder %s19, 0
      %p103 = por %p101, %p102
      %p104 = scmp.ne.s32.totalorder %s92, %s93
      %p105 = scmp.eq.s32.totalorder %s20, 1
      %p106 = por %p104, %p105
      %p108 = scmp.ne.s32.totalorder %s93, %s107
      %p109 = scmp.eq.s32.totalorder %s20, 0
      %p110 = por %p108, %p109
      %s111 = ssub.s32 %s14, %s21
      %p112 = scmp.eq.s32.totalorder %s111, 0
      %s114 = sadd.s32 %s113, 1
      %s115 = scalar_select %p112, %s113, %s114
      %p118 = pneg %p112
      %p119 = scmp.eq.s32.totalorder %s14, 1
      %p120 = por %p118, %p119
      %p121 = scmp.ne.s32.totalorder %s113, %s116
      %p122 = scmp.eq.s32.totalorder %s14, 0
      %p123 = por %p121, %p122
      %p124 = scmp.ne.s32.totalorder %s113, %s116
      %p125 = scmp.eq.s32.totalorder %s19, 1
      %p126 = por %p124, %p125
      %p127 = scmp.ne.s32.totalorder %s116, %s117
      %p128 = scmp.eq.s32.totalorder %s19, 0
      %p129 = por %p127, %p128
      %p130 = scmp.ne.s32.totalorder %s116, %s117
      %p131 = scmp.eq.s32.totalorder %s20, 1
      %p132 = por %p130, %p131
      %p134 = scmp.ne.s32.totalorder %s117, %s133
      %p135 = scmp.eq.s32.totalorder %s20, 0
      %p136 = por %p134, %p135
      %p137 = scmp.le.s32.totalorder 1, %s14
      %p138 = scmp.lt.s32.totalorder %s14, 3
      %p139 = pnand %p137, %p138
      %p140 = pneg %p139
      // Predicated region
      $region9: #{tpu_custom_call.1} parent=5 // pred_check
        _
      $region10: #{tpu_custom_call.1} parent=5 // pred_check_branch
        %142 = sbr.rel (%p139) target = $region12
      $region11: #{tpu_custom_call.1} parent=5 // pred_region
        %s143 = ssub.s32 %s14, 1
        // Predicated region
        $region13: #{tpu_custom_call.1} parent=11 // pred_check
          %p144 = pneg %p61
        $region14: #{tpu_custom_call.1} parent=11 // pred_check_branch
          %146 = sbr.rel (%p144) target = $region16
        $region15: #{tpu_custom_call.1} parent=11 // pred_region
          %s148 = ssub.s32 128, 128
          %149 = vsyncadd [#allocation4], %s148
          %s151 = sshll.u32 [#allocation3], 4
          %s152 = int_to_ptr.vmem [resolvable:$true] %s151
          %154 = dma.hbm_to_vmem [thread:$0]  %s1, 128, %s152, [#allocation4]
        $region16: #{tpu_custom_call.1} parent=11 // pred_fallthru
          _
        // Predicated region
        $region17: #{tpu_custom_call.1} parent=11 // pred_check
          %p155 = pneg %p82
        $region18: #{tpu_custom_call.1} parent=11 // pred_check_branch
          %157 = sbr.rel (%p155) target = $region20
        $region19: #{tpu_custom_call.1} parent=11 // pred_region
          _
        $region20: #{tpu_custom_call.1} parent=11 // pred_fallthru
          _
        // Predicated region
        $region21: #{tpu_custom_call.1} parent=11 // pred_check
          %p158 = pneg %p103
        $region22: #{tpu_custom_call.1} parent=11 // pred_check_branch
          %160 = sbr.rel (%p158) target = $region24
        $region23: #{tpu_custom_call.1} parent=11 // pred_region
          _
        $region24: #{tpu_custom_call.1} parent=11 // pred_fallthru
          _
      $region12: #{tpu_custom_call.1} parent=5 // pred_fallthru
        _
      %p161 = scmp.lt.s32.totalorder %s14, 2
      // Predicated region
      $region25: #{tpu_custom_call.1} parent=5 // pred_check
        %p162 = pneg %p161
      $region26: #{tpu_custom_call.1} parent=5 // pred_check_branch
        %164 = sbr.rel (%p162) target = $region28
      $region27: #{tpu_custom_call.1} parent=5 // pred_region
        // Predicated region
        $region29: #{tpu_custom_call.1} parent=27 // pred_check
          %p165 = pneg %p34
        $region30: #{tpu_custom_call.1} parent=27 // pred_check_branch
          %167 = sbr.rel (%p165) target = $region32
        $region31: #{tpu_custom_call.1} parent=27 // pred_region
          %p168 = scmp.lt.s32.totalorder %s14, 1
          %s169 = scalar_select %p168, %s14, 1
          %s170 = smul.addr %s169, 2
          %s171 = smul.addr %s170, 4
          %s172 = scalar_lea.vmem %s0, %s171
        $region32: #{tpu_custom_call.1} parent=27 // pred_fallthru
          _
      $region28: #{tpu_custom_call.1} parent=5 // pred_fallthru
        _
      %p173 = scmp.le.s32.totalorder 1, %s14
      %p174 = scmp.lt.s32.totalorder %s14, 3
      %p175 = pnand %p173, %p174
      %p176 = pneg %p175
      // Predicated region
      $region33: #{tpu_custom_call.1} parent=5 // pred_check
        _
      $region34: #{tpu_custom_call.1} parent=5 // pred_check_branch
        %178 = sbr.rel (%p175) target = $region36
      $region35: #{tpu_custom_call.1} parent=5 // pred_region
        %s179 = ssub.s32 %s14, 1
        // Predicated region
        $region37: #{tpu_custom_call.1} parent=35 // pred_check
          %p180 = pneg %p61
        $region38: #{tpu_custom_call.1} parent=35 // pred_check_branch
          %182 = sbr.rel (%p180) target = $region40
        $region39: #{tpu_custom_call.1} parent=35 // pred_region
          %183 = dma.done [#allocation4], 128
        $region40: #{tpu_custom_call.1} parent=35 // pred_fallthru
          _
        %p184 = scmp.lt.s32.totalorder %s19, 1
        %s185 = scalar_select %p184, %s19, 1
        %s186 = smul.addr %s185, 2
        %s187 = smul.addr %s186, 4
        %s188 = scalar_lea.vmem %s0, %s187
        %p189 = pneg %p40
        %p190 = pneg %p37
        %p191 = pneg %p61
        %p192 = pneg %p58
        %p193 = pneg %p82
        %p194 = pneg %p79
        %p195 = pneg %p103
        %p196 = pneg %p100
        %p197 = pneg %p129
        %p198 = pneg %p126
        %s199 = sand.u32 %s116, 1
        %s200 = scalar_lea.sflag [#allocation5], %s199
        %s201 = sand.u32 %s116, 1
        %s202 = smul.addr %s201, 16
        %s203 = scalar_lea.vmem [#allocation6], %s202
        %p204 = scmp.lt.s32.totalorder %s19, 1
        %s205 = scalar_select %p204, %s19, 1
        %s206 = smul.addr %s205, 2
        %s207 = smul.addr %s206, 4
        %s208 = scalar_lea.vmem %s0, %s207
        %209 = vst [vmem:[#allocation2] sm:$0xf] 0.0
        %210 = vst [vmem:[#allocation2 + $0xc] sm:$0xf] 0.0
        %v211 = vld [vmem:[%s208] sm:$0xff]
        %212 = vst [vmem:[#allocation2 + $0x4] sm:$0xff] %v211
        %v213 = vlaneseq
        %v214 = vand.u32 %v213, 127
        %v215 = vadd.s32 %v214, 128
        %vm216 = vcmp.lt.s32.totalorder %v214, 0
        %v217 = vsub.s32 0, %v214
        %v218 = vsel %vm216, %v217, %v214
        %v219 = vshrl.u32 %v218, 4
        %v220 = vand.u32 %v218, 15
        %v221 = vsub.s32 0, %v220
        %v222 = vsel %vm216, %v221, %v220
        %vm223 = vcmp.lt.s32.totalorder %v215, 0
        %v224 = vsub.s32 0, %v215
        %v225 = vsel %vm223, %v224, %v215
        %v226 = vshrl.u32 %v225, 4
        %v227 = vand.u32 %v225, 15
        %v228 = vsub.s32 0, %v227
        %v229 = vsel %vm223, %v228, %v227
        %vm230 = vcmp.ne.s32.totalorder %v222, 0
        %vm231 = vcmp.ne.s32.totalorder %v229, 0
        %vm232 = vcmp.lt.s32.totalorder %v222, 0
        %vm233 = vcmp.lt.s32.totalorder %v229, 0
        %vm234 = vmand %vm232, %vm230
        %vm235 = vmand %vm233, %vm231
        %v236 = vadd.s32 %v222, 16
        %v237 = vadd.s32 %v229, 16
        %v238 = vsel %vm234, %v236, %v222
        %v239 = vsel %vm235, %v237, %v229
        %vm240 = vcmp.ge.s32.totalorder %v238, 1
        %vm241 = vcmp.ge.s32.totalorder %v239, 1
        %v242 = vsel %vm240, 1, 0
        %v243 = vsel %vm241, 1, 0
        %vm244 = vcmp.eq.s32.totalorder %v242, 1
        %vm245 = vcmp.eq.s32.totalorder %v243, 1
        %vm246 = vcmp.lt.s32.totalorder %v238, 15
        %vm247 = vcmp.lt.s32.totalorder %v239, 15
        %v248 = vsel %vm246, 1, 0
        %v249 = vsel %vm247, 1, 0
        %vm250 = vcmp.eq.s32.totalorder %v248, 1
        %vm251 = vcmp.eq.s32.totalorder %v249, 1
        %v252 = vld [vmem:[#allocation2] sm:$0xff]
        %v253 = vld [vmem:[#allocation2 + $0x8] sm:$0xf]
        %v256 = vcombine.high %v252, %v252
        %257 = vrot.lane.b32.xlu0 %v252, 17
        %v258 = vpop.permute.xlu0 %257
        %259 = vrot.lane.b32.xlu0 %v256, 17
        %v260 = vpop.permute.xlu0 %259
        %261 = vrot.lane.b32.xlu0 %v253, 17
        %v262 = vpop.permute.xlu0 %261
        %vm263 = vcmask 138240
        %v264 = vsel %vm263, %v258, %v260
        %v265 = vsel %vm263, %v260, %v262
        %v268 = vsel %vm244, %v264, 0.0
        %v269 = vsel %vm245, %v265, 0.0
        %270 = vrot.lane.b32.xlu0 %v252, 15
        %v271 = vpop.permute.xlu0 %270
        %272 = vrot.lane.b32.xlu0 %v256, 15
        %v273 = vpop.permute.xlu0 %272
        %274 = vrot.lane.b32.xlu0 %v253, 15
        %v275 = vpop.permute.xlu0 %274
        %vm276 = vcmask 121856
        %v277 = vsel %vm276, %v271, %v273
        %v278 = vsel %vm276, %v273, %v275
        %v281 = vsel %vm250, %v277, 0.0
        %v282 = vsel %vm251, %v278, 0.0
        %283 = vrot.lane.b32.xlu0 %v252, 1
        %v284 = vpop.permute.xlu0 %283
        %285 = vrot.lane.b32.xlu0 %v256, 1
        %v286 = vpop.permute.xlu0 %285
        %287 = vrot.lane.b32.xlu0 %v253, 1
        %v288 = vpop.permute.xlu0 %287
        %vm289 = vcmask 7168
        %v290 = vsel %vm289, %v284, %v286
        %v291 = vsel %vm289, %v286, %v288
        %v294 = vsel %vm244, %v290, 0.0
        %v295 = vsel %vm245, %v291, 0.0
        %v296 = vld [vmem:[#allocation2 + $0x4] sm:$0xff]
        %v297 = vld [vmem:[#allocation2 + $0x4] sm:$0xff]
        %v298 = vld [vmem:[#allocation2 + $0xc] sm:$0xf]
        %v301 = vcombine.high %v297, %v297
        %302 = vrot.lane.b32.xlu0 %v297, 127
        %v303 = vpop.permute.xlu0 %302
        %304 = vrot.lane.b32.xlu0 %v301, 127
        %v305 = vpop.permute.xlu0 %304
        %306 = vrot.lane.b32.xlu0 %v298, 127
        %v307 = vpop.permute.xlu0 %306
        %vm308 = vcmask 1039360
        %v309 = vsel %vm308, %v303, %v305
        %v310 = vsel %vm308, %v305, %v307
        %v313 = vsel %vm250, %v309, 0.0
        %v314 = vsel %vm251, %v310, 0.0
        %315 = vrot.lane.b32.xlu0 %v297, 113
        %v316 = vpop.permute.xlu0 %315
        %317 = vrot.lane.b32.xlu0 %v301, 113
        %v318 = vpop.permute.xlu0 %317
        %319 = vrot.lane.b32.xlu0 %v298, 113
        %v320 = vpop.permute.xlu0 %319
        %vm321 = vcmask 924672
        %v322 = vsel %vm321, %v316, %v318
        %v323 = vsel %vm321, %v318, %v320
        %v326 = vsel %vm244, %v322, 0.0
        %v327 = vsel %vm245, %v323, 0.0
        %328 = vrot.lane.b32.xlu0 %v297, 111
        %v329 = vpop.permute.xlu0 %328
        %330 = vrot.lane.b32.xlu0 %v301, 111
        %v331 = vpop.permute.xlu0 %330
        %332 = vrot.lane.b32.xlu0 %v298, 111
        %v333 = vpop.permute.xlu0 %332
        %vm334 = vcmask 908288
        %v335 = vsel %vm334, %v329, %v331
        %v336 = vsel %vm334, %v331, %v333
        %v339 = vsel %vm250, %v335, 0.0
        %v340 = vsel %vm251, %v336, 0.0
        %v341 = vcombine.low %v252, %v252
        %v342 = vcombine.low %v253, %v253
        %343 = vrot.lane.b32.xlu0 %v341, 16
        %v344 = vpop.permute.xlu0 %343
        %345 = vrot.lane.b32.xlu0 %v252, 16
        %v346 = vpop.permute.xlu0 %345
        %347 = vrot.lane.b32.xlu0 %v342, 16
        %v348 = vpop.permute.xlu0 %347
        %vm349 = vcmask 130048
        %v350 = vsel %vm349, %v344, %v346
        %v351 = vsel %vm349, %v346, %v348
        %v356 = vrot.slane %v294, 4
        %v357 = vrot.slane %v295, 4
        %v361 = vcombine.high %v296, %v296
        %v365 = vrot.slane %v313, 4
        %v366 = vrot.slane %v314, 4
        %v369 = vcombine.low %v297, %v297
        %v370 = vcombine.low %v298, %v298
        %371 = vrot.lane.b32.xlu0 %v369, 112
        %v372 = vpop.permute.xlu0 %371
        %373 = vrot.lane.b32.xlu0 %v297, 112
        %v374 = vpop.permute.xlu0 %373
        %375 = vrot.lane.b32.xlu0 %v370, 112
        %v376 = vpop.permute.xlu0 %375
        %vm377 = vcmask 916480
        %v378 = vsel %vm377, %v372, %v374
        %v379 = vsel %vm377, %v374, %v376
        %vm382 = vcmask 1043456
        %v383 = vsel %vm382, %v268, %v350
        %v384 = vsel %vm382, %v269, %v351
        %v385 = vsel %vm382, %v281, %v356
        %v386 = vsel %vm382, %v282, %v357
        %v387 = vsel %vm382, %v296, %v365
        %v388 = vsel %vm382, %v361, %v366
        %v389 = vsel %vm382, %v326, %v378
        %v390 = vsel %vm382, %v327, %v379
        %v391 = vld [vmem:[#allocation3] sm:$0xff]
        %vm392 = vcmask 293888
        %v394 = vsel %vm392, %v391, 0
        %v397 = vsel %vm382, %v339, 0
        %v400 = vsel %vm382, %v340, 0
        %402 = vmatprep.subr.mxu0 0.0
        %403 = vmatpush1.msra.mxu0 0.0
        %404 = vmatprep.subr.mxu0 0.0
        %405 = vmatpush1.msra.mxu0 0.0
        %406 = vmatprep.subr.mxu0 0.0
        %407 = vmatpush1.msra.mxu0 0.0
        %408 = vmatprep.subr.mxu0 0.0
        %409 = vmatpush1.msra.mxu0 0.0
        %410 = vmatprep.subr.mxu0 0.0
        %411 = vmatpush1.msra.mxu0 0.0
        %412 = vmatprep.subr.mxu0 0.0
        %413 = vmatpush1.msra.mxu0 0.0
        %414 = vmatprep.subr.mxu0 0.0
        %415 = vmatpush1.msra.mxu0 0.0
        %416 = vmatprep.subr.mxu0 0.0
        %417 = vmatpush1.msra.mxu0 0.0
        %418 = vmatprep.subr.mxu0 0.0
        %419 = vmatpush1.msra.mxu0 0.0
        %420 = vmatprep.subr.mxu0 0.0
        %421 = vmatpush1.msra.mxu0 0.0
        %422 = vmatprep.subr.mxu0 0.0
        %423 = vmatpush1.msra.mxu0 0.0
        %424 = vmatprep.subr.mxu0 %v400
        %425 = vmatpush1.msra.mxu0 %v397
        %426 = vmatprep.subr.mxu0 %v390
        %427 = vmatpush1.msra.mxu0 %v389
        %428 = vmatprep.subr.mxu0 %v388
        %429 = vmatpush1.msra.mxu0 %v387
        %430 = vmatprep.subr.mxu0 %v386
        %431 = vmatpush1.msra.mxu0 %v385
        %432 = vmatprep.subr.mxu0 %v384
        %433 = vmatpush1.msra.mxu0 %v383
        %434 = vmatprep.subr.mxu0 0.0
        %435 = vmatpush2.msra.mxu0 0.0
        %436 = vmatprep.subr.mxu0 0.0
        %437 = vmatpush2.msra.mxu0 0.0
        %438 = vmatprep.subr.mxu0 0.0
        %439 = vmatpush2.msra.mxu0 0.0
        %440 = vmatprep.subr.mxu0 0.0
        %441 = vmatpush2.msra.mxu0 0.0
        %442 = vmatprep.subr.mxu0 0.0
        %443 = vmatpush2.msra.mxu0 0.0
        %444 = vmatprep.subr.mxu0 0.0
        %445 = vmatpush2.msra.mxu0 0.0
        %446 = vmatprep.subr.mxu0 0.0
        %447 = vmatpush2.msra.mxu0 0.0
        %448 = vmatprep.subr.mxu0 0.0
        %449 = vmatpush2.msra.mxu0 0.0
        %450 = vmatprep.subr.mxu0 0.0
        %451 = vmatpush2.msra.mxu0 0.0
        %452 = vmatprep.subr.mxu0 0.0
        %453 = vmatpush2.msra.mxu0 0.0
        %454 = vmatprep.subr.mxu0 0.0
        %455 = vmatpush2.msra.mxu0 0.0
        %456 = vmatprep.subr.mxu0 0.0
        %457 = vmatpush2.msra.mxu0 0.0
        %458 = vmatprep.subr.mxu0 0.0
        %459 = vmatpush2.msra.mxu0 0.0
        %460 = vmatprep.subr.mxu0 0.0
        %461 = vmatpush2.msra.mxu0 0.0
        %462 = vmatprep.subr.mxu0 0.0
        %463 = vmatpush2.msra.mxu0 0.0
        %464 = vmatprep.subr.mxu0 0.0
        %465 = vmatpush2.msra.mxu0 0.0
        %466 = vmatprep.mubr.f32.mxu0 0.0
        %467 = vmatmul.mubr.f32.gmra.mxu0 %v394
        %v468 = vpop.f32.mrf.mxu0
        %v469 = vadd.f32 0.0, %v468
        %v470 = vpop.f32.mrf.mxu0
        %v471 = vadd.f32 0.0, %v470
        %472 = vdwg.mxu0
        %v473 = vld [vmem:[%s2] sm:$0xff]
        %v474 = vld [vmem:[%s3] sm:$0xff]
        %v475 = vadd.f32 %v469, %v471
        %476 = vadd.xlane.f32.xlu0 %v475
        %v477 = vpop.xlane.xlu0 %476
        %v478 = vmul.f32 %v477, 0.00390625
        %v479 = vsub.f32 %v469, %v478
        %v480 = vsub.f32 %v471, %v478
        %v481 = vmul.f32 %v479, %v479
        %v482 = vmul.f32 %v480, %v480
        %v483 = vadd.f32 %v481, %v482
        %484 = vadd.xlane.f32.xlu0 %v483
        %v485 = vpop.xlane.xlu0 %484
        %v486 = vmul.f32 %v485, 0.00390625
        %v487 = vadd.f32 %v486, 0.001
        %v488 = vrsqrt.pop %v487
        %v489 = vmul.f32 %v473, %v488
        %491 = vset.pattern.permute.xlu0 0
        %492 = vperm.xlu0 %491, %v489
        %v493 = vpop.permute.xlu0 %492
        %v495 = vmul.f32 %v479, %v493
        %v496 = vmul.f32 %v480, %v493
        %498 = vset.pattern.permute.xlu0 0
        %499 = vperm.xlu0 %498, %v474
        %v500 = vpop.permute.xlu0 %499
        %v502 = vadd.f32 %v495, %v500
        %v503 = vadd.f32 %v496, %v500
        %v504 = vmax.f32 %v502, 0.0
        %v505 = vmax.f32 %v503, 0.0
        %506 = vst [vmem:[%s203] sm:$0xff] %v504
        %507 = vst [vmem:[%s203 + $0x8] sm:$0xff] %v505
        %s508 = sand.u32 %s116, 1
        %s509 = scalar_lea.sflag [#allocation5], %s508
        %s510 = sand.u32 %s116, 1
        %s511 = smul.addr %s510, 16
        %s512 = scalar_lea.vmem [#allocation6], %s511
        // Predicated region
        $region41: #{tpu_custom_call.1} parent=35 // pred_check
          %p513 = pneg %p126
        $region42: #{tpu_custom_call.1} parent=35 // pred_check_branch
          %515 = sbr.rel (%p513) target = $region44
        $region43: #{tpu_custom_call.1} parent=35 // pred_region
          %s517 = ssub.s32 256, 256
          %518 = vsyncadd %s509, %s517
          %s519 = smul.addr %s19, 2
          %s520 = smul.addr %s519, 128
          %s521 = scalar_lea.hbm %s4, %s520
          %s523 = sshll.u32 %s512, 4
          %s524 = int_to_ptr.vmem [resolvable:$true] %s523
          %526 = dma.vmem_to_hbm [thread:$0]  %s524, 256, %s521, %s509
        $region44: #{tpu_custom_call.1} parent=35 // pred_fallthru
          _
      $region36: #{tpu_custom_call.1} parent=5 // pred_fallthru
        _
      %p527 = scmp.le.s32.totalorder 2, %s14
      // Predicated region
      $region45: #{tpu_custom_call.1} parent=5 // pred_check
        %p528 = pneg %p527
      $region46: #{tpu_custom_call.1} parent=5 // pred_check_branch
        %530 = sbr.rel (%p528) target = $region48
      $region47: #{tpu_custom_call.1} parent=5 // pred_region
        %s531 = ssub.s32 %s14, 2
        // Predicated region
        $region49: #{tpu_custom_call.1} parent=47 // pred_check
          %p532 = pneg %p132
        $region50: #{tpu_custom_call.1} parent=47 // pred_check_branch
          %534 = sbr.rel (%p532) target = $region52
        $region51: #{tpu_custom_call.1} parent=47 // pred_region
          %s535 = sand.u32 %s117, 1
          %s536 = scalar_lea.sflag [#allocation5], %s535
          %s537 = sand.u32 %s117, 1
          %s538 = smul.addr %s537, 16
          %s539 = scalar_lea.vmem [#allocation6], %s538
          %540 = dma.done %s536, 256
        $region52: #{tpu_custom_call.1} parent=47 // pred_fallthru
          _
      $region48: #{tpu_custom_call.1} parent=5 // pred_fallthru
        _
    $region6: #{tpu_custom_call.1} parent=1 // loop_footer
      %s18 = sadd.s32 1, %s14
    $region7: #{tpu_custom_call.1} parent=1 // loop_footer_branch
      %13 = sbr.rel target = $region3
    $region8: #{tpu_custom_call.1} parent=1 // loop_exit
      _
    %541 = vsyncpa [#allocation4], 1
    %s542 = scalar_lea.sflag [#allocation4], 1
    %543 = vsyncpa %s542, 1
    %544 = vsyncpa [#allocation5], 1
    %s545 = scalar_lea.sflag [#allocation5], 1
    %546 = vsyncpa %s545, 1

</llo_original>
